<compile_context>
chip_gen: v5e
topology: v5e:2x2
jax: 0.10.0
libtpu: 0.0.40
codegen_flags: <defaults>
</compile_context>

<pallas_src>
import jax
import jax.numpy as jnp
from jax.experimental import pallas as pl
from jax.experimental.pallas import tpu as pltpu


def _mm_add_add_kernel(x1_ref, inp1_ref, inp2_ref, out_ref):
    # (1) Independent of the matmul — pure VPU add in the native (B, M, M)
    #     layout, issued first so it never waits on the reduction.
    s = inp1_ref[...] + inp2_ref[...]                      # (B, M, M)

    # (2) Tiny matmul as K unrolled outer products on the VPU:
    #       v1[i, j] = sum_k x1[i, k] * x1[k, j]
    #     (3 lane-broadcasts + 3 sublane-broadcasts + 3 muls + 2 adds; no MXU
    #     push/pop latency, no cross-lane shuffles beyond the broadcasts).
    x = x1_ref[...]                                        # (M, M)
    m = x1_ref.shape[0]                                    # static at trace time
    v1 = x[:, 0:1] * x[0:1, :]
    for k in range(1, m):
        v1 = v1 + x[:, k:k + 1] * x[k:k + 1, :]

    # (3) Broadcast the (M, M) matmul result across the batch dim and store.
    out_ref[...] = (s + v1[None, :, :]).astype(out_ref.dtype)


def model_forward(x1, x2, inp1, inp2):
    # x2 is intentionally unused (matches the PyTorch module).
    del x2
    B, M, _ = inp1.shape

    vmem_spec = lambda: pl.BlockSpec(memory_space=pltpu.MemorySpace.VMEM)
    flops = 2 * M * M * M + 2 * B * M * M                  # matmul + two adds
    bytes_accessed = 4 * (M * M + 3 * B * M * M)           # x1 + inp1 + inp2 + out

    return pl.pallas_call(
        _mm_add_add_kernel,
        out_shape=jax.ShapeDtypeStruct((B, M, M), jnp.float32),
        in_specs=[vmem_spec(), vmem_spec(), vmem_spec()],
        out_specs=vmem_spec(),
        cost_estimate=pl.CostEstimate(
            flops=flops, transcendentals=0, bytes_accessed=bytes_accessed
        ),
    )(x1, inp1, inp2)


if __name__ == "__main__":
    key = jax.random.PRNGKey(0)
    k1, k2, k3, k4 = jax.random.split(key, 4)

    # Shapes consistent with the PyTorch module: x1,x2 = (3,3), inp1,inp2 = (3,3,3)
    x1 = jax.random.normal(k1, (3, 3), dtype=jnp.float32)
    x2 = jax.random.normal(k2, (3, 3), dtype=jnp.float32)
    inp1 = jax.random.normal(k3, (3, 3, 3), dtype=jnp.float32)
    inp2 = jax.random.normal(k4, (3, 3, 3), dtype=jnp.float32)

    out = jax.jit(model_forward)(x1, x2, inp1, inp2)
    jax.block_until_ready(out)

    # Reference check in plain JAX.
    ref = jnp.dot(x1, x1)[None, :, :] + inp1 + inp2
    assert out.shape == (3, 3, 3)
    assert jnp.allclose(out, ref, atol=1e-5, rtol=1e-5)

    print("KERNEL_OK")
</pallas_src>

<mosaic_0001>
module attributes {stable_mosaic.version = 11 : i64} {
  func.func @_mm_add_add_kernel(%arg0: memref<3x3xf32, #tpu.memory_space<vmem>>, %arg1: memref<3x3x3xf32, #tpu.memory_space<vmem>>, %arg2: memref<3x3x3xf32, #tpu.memory_space<vmem>>, %arg3: memref<3x3x3xf32, #tpu.memory_space<vmem>>) attributes {dimension_semantics = [], scalar_prefetch = 0 : i64, scratch_operands = 0 : i64, tpu.core_type = #tpu.core_type<tc>} {
    %c0 = arith.constant 0 : index
    %c0_0 = arith.constant 0 : index
    %c0_1 = arith.constant 0 : index
    %0 = vector.load %arg1[%c0, %c0_0, %c0_1] : memref<3x3x3xf32, #tpu.memory_space<vmem>>, vector<3x3x3xf32>
    %c0_2 = arith.constant 0 : index
    %c0_3 = arith.constant 0 : index
    %c0_4 = arith.constant 0 : index
    %1 = vector.load %arg2[%c0_2, %c0_3, %c0_4] : memref<3x3x3xf32, #tpu.memory_space<vmem>>, vector<3x3x3xf32>
    %2 = arith.addf %0, %1 : vector<3x3x3xf32>
    %c0_5 = arith.constant 0 : index
    %c0_6 = arith.constant 0 : index
    %3 = vector.load %arg0[%c0_5, %c0_6] : memref<3x3xf32, #tpu.memory_space<vmem>>, vector<3x3xf32>
    %4 = vector.extract_strided_slice %3 {offsets = [0, 0], sizes = [3, 1], strides = [1, 1]} : vector<3x3xf32> to vector<3x1xf32>
    %5 = vector.extract_strided_slice %3 {offsets = [0, 0], sizes = [1, 3], strides = [1, 1]} : vector<3x3xf32> to vector<1x3xf32>
    %6 = vector.broadcast %4 : vector<3x1xf32> to vector<3x3xf32>
    %7 = vector.broadcast %5 : vector<1x3xf32> to vector<3x3xf32>
    %8 = arith.mulf %6, %7 : vector<3x3xf32>
    %9 = vector.extract_strided_slice %3 {offsets = [0, 1], sizes = [3, 1], strides = [1, 1]} : vector<3x3xf32> to vector<3x1xf32>
    %10 = vector.extract_strided_slice %3 {offsets = [1, 0], sizes = [1, 3], strides = [1, 1]} : vector<3x3xf32> to vector<1x3xf32>
    %11 = vector.broadcast %9 : vector<3x1xf32> to vector<3x3xf32>
    %12 = vector.broadcast %10 : vector<1x3xf32> to vector<3x3xf32>
    %13 = arith.mulf %11, %12 : vector<3x3xf32>
    %14 = arith.addf %8, %13 : vector<3x3xf32>
    %15 = vector.extract_strided_slice %3 {offsets = [0, 2], sizes = [3, 1], strides = [1, 1]} : vector<3x3xf32> to vector<3x1xf32>
    %16 = vector.extract_strided_slice %3 {offsets = [2, 0], sizes = [1, 3], strides = [1, 1]} : vector<3x3xf32> to vector<1x3xf32>
    %17 = vector.broadcast %15 : vector<3x1xf32> to vector<3x3xf32>
    %18 = vector.broadcast %16 : vector<1x3xf32> to vector<3x3xf32>
    %19 = arith.mulf %17, %18 : vector<3x3xf32>
    %20 = arith.addf %14, %19 : vector<3x3xf32>
    %21 = vector.shape_cast %20 : vector<3x3xf32> to vector<1x3x3xf32>
    %22 = vector.broadcast %21 : vector<1x3x3xf32> to vector<3x3x3xf32>
    %23 = arith.addf %2, %22 : vector<3x3x3xf32>
    %c0_7 = arith.constant 0 : index
    %c0_8 = arith.constant 0 : index
    %c0_9 = arith.constant 0 : index
    %24 = vector.load %arg3[%c0_7, %c0_8, %c0_9] : memref<3x3x3xf32, #tpu.memory_space<vmem>>, vector<3x3x3xf32>
    tpu.vector_store %arg3[%c0_7, %c0_8, %c0_9], %23 {strides = array<i32>} : memref<3x3x3xf32, #tpu.memory_space<vmem>>, vector<3x3x3xf32>,
    return
  }
}

</mosaic_0001>

<llo_original>
// kernel: model_forward.1
$region0: #{model_forward.1}
  #allocation0 [shape = 'u32[]', space=smem, size = 0x4, offset = 0x4, fixed_abs, tag = 'smem constant byte address 0x4 - core index']
  #allocation1 [shape = 'u32[72,128]{1,0:T(1,128)}', space=vmem, size = 0x9000, scoped, tag = 'internal scratch']
  %s0 = inlined_call_operand.hbm [shape: f32[3,3], index: 0, kind: input, shape index: {}]
  %s1 = inlined_call_operand.hbm [shape: f32[3,3,3], index: 1, kind: input, shape index: {}]
  %s2 = inlined_call_operand.hbm [shape: f32[3,3,3], index: 2, kind: input, shape index: {}]
  %s3 = inlined_call_operand.hbm [shape: f32[3,3,3], index: 3, kind: output, shape index: {}]
  %s4 = sld [smem:[#allocation0]]
  $region34: #{model_forward.1} parent=0
    _
  %s6 = ssub.s32 1, %s4
  %s7 = scalar_select 0, %s6, %s4
  $region1: #{model_forward.1} parent=0
    #allocation2 [shape = 'u8[2048]{0}', space=vmem, size = 0x800, scoped, tag = 'input window, operand 0, single buffered']
    #allocation3 [shape = 's32[1]{0}', space=sflag, size = 0x4, scoped, tag = 'scoped memory for model_forward.1']
    #allocation4 [shape = 's32[1]{0}', space=sflag, size = 0x4, scoped, tag = 'scoped memory for model_forward.1']
    #allocation5 [shape = 'u8[6144]{0}', space=vmem, size = 0x1800, scoped, tag = 'input window, operand 1, single buffered']
    #allocation6 [shape = 's32[1]{0}', space=sflag, size = 0x4, scoped, tag = 'scoped memory for model_forward.1']
    #allocation7 [shape = 'u8[6144]{0}', space=vmem, size = 0x1800, scoped, tag = 'input window, operand 2, single buffered']
    #allocation8 [shape = 'u8[6144]{0}', space=vmem, size = 0x1800, scoped, tag = 'output window, operand 0, single buffered']
    %8 = vsyncpa [#allocation3], 0
    %9 = vsyncpa [#allocation6], 0
    %10 = vsyncpa [#allocation4], 0
    // Predicated region
    $region2: #{model_forward.1} parent=1 // pred_check
      _
    $region3: #{model_forward.1} parent=1 // pred_check_branch
      %12 = sbr.rel (0) target = $region5
    $region4: #{model_forward.1} parent=1 // pred_region
      %14 = vsyncadd [#allocation3], 0
      %s16 = sshll.u32 %s0, 4
      %s17 = int_to_ptr.hbm [resolvable:$true] %s16
      %s18 = sshll.u32 [#allocation2], 4
      %s19 = int_to_ptr.vmem [resolvable:$true] %s18
      %21 = dma.hbm_to_vmem [thread:$0]  %s17, 64, %s19, [#allocation3]
    $region5: #{model_forward.1} parent=1 // pred_fallthru
      _
    // Predicated region
    $region6: #{model_forward.1} parent=1 // pred_check
      _
    $region7: #{model_forward.1} parent=1 // pred_check_branch
      %23 = sbr.rel (0) target = $region9
    $region8: #{model_forward.1} parent=1 // pred_region
      %25 = vsyncadd [#allocation6], 0
      %s26 = sshll.u32 %s1, 4
      %s27 = int_to_ptr.hbm [resolvable:$true] %s26
      %s28 = sshll.u32 [#allocation5], 4
      %s29 = int_to_ptr.vmem [resolvable:$true] %s28
      %34 = dma.hbm_to_vmem [thread:$0]  %s27, 192, %s29, [#allocation6], 64, 64, 4
    $region9: #{model_forward.1} parent=1 // pred_fallthru
      _
    // Predicated region
    $region10: #{model_forward.1} parent=1 // pred_check
      _
    $region11: #{model_forward.1} parent=1 // pred_check_branch
      %36 = sbr.rel (0) target = $region13
    $region12: #{model_forward.1} parent=1 // pred_region
      %38 = vsyncadd [#allocation6], 0
      %s39 = sshll.u32 %s2, 4
      %s40 = int_to_ptr.hbm [resolvable:$true] %s39
      %s41 = sshll.u32 [#allocation7], 4
      %s42 = int_to_ptr.vmem [resolvable:$true] %s41
      %47 = dma.hbm_to_vmem [thread:$0]  %s40, 192, %s42, [#allocation6], 64, 64, 4
    $region13: #{model_forward.1} parent=1 // pred_fallthru
      _
    // Predicated region
    $region14: #{model_forward.1} parent=1 // pred_check
      _
    $region15: #{model_forward.1} parent=1 // pred_check_branch
      %49 = sbr.rel (0) target = $region17
    $region16: #{model_forward.1} parent=1 // pred_region
      %51 = dma.done [#allocation3], 64
    $region17: #{model_forward.1} parent=1 // pred_fallthru
      _
    // Predicated region
    $region18: #{model_forward.1} parent=1 // pred_check
      _
    $region19: #{model_forward.1} parent=1 // pred_check_branch
      %53 = sbr.rel (0) target = $region21
    $region20: #{model_forward.1} parent=1 // pred_region
      %55 = dma.done [#allocation6], 192
    $region21: #{model_forward.1} parent=1 // pred_fallthru
      _
    // Predicated region
    $region22: #{model_forward.1} parent=1 // pred_check
      _
    $region23: #{model_forward.1} parent=1 // pred_check_branch
      %57 = sbr.rel (0) target = $region25
    $region24: #{model_forward.1} parent=1 // pred_region
      %59 = dma.done [#allocation6], 192
    $region25: #{model_forward.1} parent=1 // pred_fallthru
      _
    %v60 = vld [vmem:[#allocation5] sm:$0x7]
    %v61 = vld [vmem:[#allocation5 + $0x4] sm:$0x7]
    %v62 = vld [vmem:[#allocation5 + $0x8] sm:$0x7]
    %v63 = vld [vmem:[#allocation7] sm:$0x7]
    %v64 = vld [vmem:[#allocation7 + $0x4] sm:$0x7]
    %v65 = vld [vmem:[#allocation7 + $0x8] sm:$0x7]
    %v66 = vadd.f32 %v60, %v63
    %v67 = vadd.f32 %v61, %v64
    %v68 = vadd.f32 %v62, %v65
    %v69 = vld [vmem:[#allocation2] sm:$0x7]
    %71 = vset.pattern.permute.xlu0 0
    %72 = vperm.xlu0 %71, %v69
    %v73 = vpop.permute.xlu0 %72
    %v75 = vperm.slane %v69, 0
    %v76 = vmul.f32 %v73, %v75
    %77 = vset.pattern.permute.xlu0 1
    %78 = vperm.xlu0 %77, %v69
    %v79 = vpop.permute.xlu0 %78
    %v81 = vperm.slane %v69, 1
    %v82 = vmul.f32 %v79, %v81
    %v83 = vadd.f32 %v76, %v82
    %84 = vset.pattern.permute.xlu0 2
    %85 = vperm.xlu0 %84, %v69
    %v86 = vpop.permute.xlu0 %85
    %v88 = vperm.slane %v69, 2
    %v89 = vmul.f32 %v86, %v88
    %v90 = vadd.f32 %v83, %v89
    %v91 = vadd.f32 %v66, %v90
    %v92 = vadd.f32 %v67, %v90
    %v93 = vadd.f32 %v68, %v90
    %vm94 = vcmask 18432
    %95 = vst.msk [vmem:[#allocation8] sm:$0x7] %vm94, %v91
    %96 = vst.msk [vmem:[#allocation8 + $0x4] sm:$0x7] %vm94, %v92
    %97 = vst.msk [vmem:[#allocation8 + $0x8] sm:$0x7] %vm94, %v93
    // Predicated region
    $region26: #{model_forward.1} parent=1 // pred_check
      _
    $region27: #{model_forward.1} parent=1 // pred_check_branch
      %99 = sbr.rel (0) target = $region29
    $region28: #{model_forward.1} parent=1 // pred_region
      %101 = vsyncadd [#allocation4], 0
      %s102 = sshll.u32 [#allocation8], 4
      %s103 = int_to_ptr.vmem [resolvable:$true] %s102
      %s104 = sshll.u32 %s3, 4
      %s105 = int_to_ptr.hbm [resolvable:$true] %s104
      %110 = dma.vmem_to_hbm [thread:$0]  %s103, 192, %s105, [#allocation4], 64, 64, 4
    $region29: #{model_forward.1} parent=1 // pred_fallthru
      _
    // Predicated region
    $region30: #{model_forward.1} parent=1 // pred_check
      _
    $region31: #{model_forward.1} parent=1 // pred_check_branch
      %112 = sbr.rel (0) target = $region33
    $region32: #{model_forward.1} parent=1 // pred_region
      %114 = dma.done [#allocation4], 192
    $region33: #{model_forward.1} parent=1 // pred_fallthru
      _
    %115 = vsyncpa [#allocation3], 1
    %116 = vsyncpa [#allocation6], 1
    %117 = vsyncpa [#allocation4], 1

</llo_original>
